<compile_context>
chip_gen: v5e
topology: v5e:2x2
jax: 0.10.0
libtpu: 0.0.40
codegen_flags: <defaults>
</compile_context>

<pallas_src>
import functools

import numpy as np

import jax
import jax.numpy as jnp
from jax.experimental import pallas as pl
from jax.experimental.pallas import tpu as pltpu


def _softplus(x):
    # numerically stable softplus, matches torch.nn.functional.softplus (beta=1)
    return jnp.maximum(x, 0.0) + jnp.log1p(jnp.exp(-jnp.abs(x)))


def _loc_scale_kernel(x_ref, w_ref, m_ref, b_ref, loc_ref, scale_ref, *,
                      event_dim, min_scale, shifts):
    # x_ref:     (BT, C_in, HW)        input images for this grid step
    # w_ref:     (C_out, T*C_in)       folded-K weight (taps stacked into the contraction dim)
    # m_ref:     (T, BT*HW)            per-tap border-validity masks, tiled over the batch tile
    # b_ref:     (C_out, 1)            bias
    # loc_ref:   (BT, event_dim, HW)   loc head   (lane-dense, native NCHW layout)
    # scale_ref: (BT, event_dim, HW)   scale head
    bt, c_in, hw = x_ref.shape
    n_taps = len(shifts)

    # Pack the batch tile into the lane axis: (C_in, BT*HW).  Each image keeps a
    # contiguous HW chunk, so tap rolls only leak across image boundaries at
    # positions the border mask zeroes anyway.
    if bt == 1:
        packed = x_ref[0]
    else:
        packed = jnp.concatenate([x_ref[b] for b in range(bt)], axis=-1)

    m_all = m_ref[...]  # (T, BT*HW) — hoisted out of the tap loop

    # Stacked activation (T*C_in, BT*HW): one lane-roll (XLU) + one mask multiply
    # (VPU) per tap, then a single MXU matmul with K = T*C_in.
    rows = []
    for t in range(n_taps):
        shifted = pltpu.roll(packed, shifts[t], 1) if shifts[t] else packed
        rows.append(shifted * m_all[t:t + 1])
    stacked = jnp.concatenate(rows, axis=0) if n_taps > 1 else rows[0]

    y = jnp.dot(w_ref[...], stacked, preferred_element_type=jnp.float32)  # (C_out, BT*HW)
    y = y + b_ref[...]                                                    # single hoisted broadcast add

    loc = y[:event_dim]
    scale = jnp.maximum(_softplus(y[event_dim:]), min_scale)  # EUP work on the scale head only

    for b in range(bt):  # static unpack of the lane-packed result back to per-image tiles
        sl = slice(b * hw, (b + 1) * hw)
        loc_ref[b] = loc[:, sl].astype(loc_ref.dtype)
        scale_ref[b] = scale[:, sl].astype(scale_ref.dtype)


def loc_scale_conv2d(
    x,
    weight,
    bias,
    *,
    event_dim,
    min_scale=1e-6,
    compute_dtype=jnp.float32,   # bf16 path available on v6e/v7x; f32 kept for 1e-4 tolerance & v5e VPU
    batch_tile=None,
):
    """_LocScaleConvNd forward for a Conv2d base layer.

    x: (N, C_in, H, W); weight: (2*event_dim, C_in, KH, KW); bias: (2*event_dim,).
    stride=1, symmetric 'same' padding (odd kernels). Returns {'loc', 'scale'} in NCHW.
    """
    n, c_in, h, w = x.shape
    c_out, c_in_w, kh, kw = weight.shape
    assert c_out == 2 * event_dim, "out_channels must be num_params * event_dim = 2 * event_dim"
    assert c_in_w == c_in
    assert kh % 2 == 1 and kw % 2 == 1, "same-padding path assumes odd kernel sizes"
    pad_h, pad_w = kh // 2, kw // 2
    hw = h * w
    n_taps = kh * kw

    in_itemsize = jnp.dtype(compute_dtype).itemsize
    out_itemsize = jnp.dtype(x.dtype).itemsize

    # ---- VMEM-aware batch packing -------------------------------------------
    try:
        vmem_cap = int(pltpu.get_tpu_info().vmem_capacity_bytes)
    except Exception:
        vmem_cap = 64 * 1024 * 1024  # v7x-safe fallback
    vmem_limit = min(int(vmem_cap * 0.75), 96 * 1024 * 1024)
    block_budget = vmem_limit // 2  # headroom for compiler scratch / temporaries

    def _tile_bytes(bt):
        lanes_ = bt * hw
        x_blk = bt * c_in * hw * in_itemsize * 2                    # double-buffered input
        o_blk = 2 * bt * event_dim * hw * out_itemsize * 2          # two heads, double-buffered
        w_blk = c_out * n_taps * c_in * in_itemsize * 2
        m_blk = n_taps * lanes_ * in_itemsize * 2
        live = (n_taps * c_in + c_in + c_out) * lanes_ * 4          # stacked + packed + f32 result
        return x_blk + o_blk + w_blk + m_blk + live

    if batch_tile is None:
        cap = max(1, n // 2) if n >= 2 else 1   # keep grid >= 2: megacore / dual-TC never idle
        batch_tile = 1
        for cand in range(1, cap + 1):
            if n % cand == 0 and _tile_bytes(cand) <= block_budget:
                batch_tile = cand
    assert n % batch_tile == 0
    lanes = batch_tile * hw
    # TODO(synk): add H-row spatial tiling (with a pad_h halo) for images whose
    # full-HW block no longer fits VMEM; full-HW blocks per image are assumed here.

    # ---- kernel operands -----------------------------------------------------
    a = x.reshape(n, c_in, hw).astype(compute_dtype)                 # (N, C_in, HW), free reshape
    # fold taps into the contraction dim: (C_out, KH*KW*C_in), row order = (dy, dx, c_in)
    w_stack = jnp.transpose(weight, (0, 2, 3, 1)).reshape(c_out, n_taps * c_in).astype(compute_dtype)
    b_mat = bias.reshape(c_out, 1).astype(jnp.float32)

    # Per-tap lane shifts (over the packed BT*HW row) and border-validity masks,
    # computed once at trace time with numpy.
    rr = np.arange(hw)
    hh, ww = rr // w, rr % w
    shifts, masks = [], []
    for dy in range(kh):
        for dx in range(kw):
            oh = hh + dy - pad_h
            ow = ww + dx - pad_w
            valid = (oh >= 0) & (oh < h) & (ow >= 0) & (ow < w)
            masks.append(valid.astype(np.float32))
            s = (dy - pad_h) * w + (dx - pad_w)    # flat source offset within one image
            shifts.append(int((-s) % lanes))       # roll shift over the packed lane axis
    mask_np = np.tile(np.stack(masks), (1, batch_tile))              # (T, BT*HW)
    mask_arr = jnp.asarray(mask_np, dtype=compute_dtype)

    kernel = functools.partial(
        _loc_scale_kernel,
        event_dim=event_dim,
        min_scale=float(min_scale),
        shifts=tuple(shifts),
    )

    cost = pl.CostEstimate(
        flops=2 * n * hw * c_out * c_in * kh * kw,
        transcendentals=2 * n * hw * event_dim,   # exp + log1p, scale head only
        bytes_accessed=int(
            a.size * a.dtype.itemsize
            + w_stack.size * w_stack.dtype.itemsize
            + mask_arr.size * mask_arr.dtype.itemsize
            + b_mat.size * 4
            + 2 * n * event_dim * hw * out_itemsize
        ),
    )

    head_shape = jax.ShapeDtypeStruct((n, event_dim, hw), x.dtype)
    head_spec = pl.BlockSpec((batch_tile, event_dim, hw), lambda i: (i, 0, 0))

    loc_flat, scale_flat = pl.pallas_call(
        kernel,
        out_shape=(head_shape, head_shape),
        grid=(n // batch_tile,),
        in_specs=[
            pl.BlockSpec((batch_tile, c_in, hw), lambda i: (i, 0, 0)),
            pl.BlockSpec((c_out, n_taps * c_in), lambda i: (0, 0)),
            pl.BlockSpec((n_taps, lanes), lambda i: (0, 0)),
            pl.BlockSpec((c_out, 1), lambda i: (0, 0)),
        ],
        out_specs=(head_spec, head_spec),
        compiler_params=pltpu.CompilerParams(
            dimension_semantics=("parallel",),
            vmem_limit_bytes=vmem_limit,
        ),
        cost_estimate=cost,
    )(a, w_stack, mask_arr, b_mat)

    return {
        "loc": loc_flat.reshape(n, event_dim, h, w),
        "scale": scale_flat.reshape(n, event_dim, h, w),
    }


def _reference(x, weight, bias, event_dim, min_scale=1e-6):
    # pure-JAX reference (lax conv, NCHW) for a correctness cross-check
    kh, kw = weight.shape[2], weight.shape[3]
    pad_h, pad_w = kh // 2, kw // 2
    y = jax.lax.conv_general_dilated(
        x.astype(jnp.float32),
        weight.astype(jnp.float32),
        window_strides=(1, 1),
        padding=[(pad_h, pad_h), (pad_w, pad_w)],
        dimension_numbers=("NCHW", "OIHW", "NCHW"),
    ) + bias.reshape(1, -1, 1, 1)
    return {
        "loc": y[:, :event_dim],
        "scale": jnp.maximum(jax.nn.softplus(y[:, event_dim : 2 * event_dim]), min_scale),
    }


if __name__ == "__main__":
    # small, module-consistent shapes: batch=2, in_channels=4, spatial=16, event_dim=4
    # => base conv out_channels = 2 * event_dim = 8, kernel 3x3, stride 1, padding 1
    key = jax.random.PRNGKey(0)
    kx, kw_key, kb_key = jax.random.split(key, 3)

    N, C_IN, H, W = 2, 4, 16, 16
    EVENT_DIM = 4
    C_OUT, KH, KW = 2 * EVENT_DIM, 3, 3

    x = jax.random.normal(kx, (N, C_IN, H, W), dtype=jnp.float32)
    fan_in = C_IN * KH * KW
    bound = 1.0 / jnp.sqrt(fan_in)
    weight = jax.random.uniform(kw_key, (C_OUT, C_IN, KH, KW), minval=-bound, maxval=bound)
    bias = jax.random.uniform(kb_key, (C_OUT,), minval=-bound, maxval=bound)

    out = loc_scale_conv2d(x, weight, bias, event_dim=EVENT_DIM)
    out = jax.block_until_ready(out)

    ref = _reference(x, weight, bias, EVENT_DIM)
    for name in ("loc", "scale"):
        assert out[name].shape == (N, EVENT_DIM, H, W), (name, out[name].shape)
        assert jnp.allclose(out[name], ref[name], atol=1e-4, rtol=1e-4), name

    print("KERNEL_OK")
</pallas_src>

<mosaic_0001>
module attributes {stable_mosaic.version = 11 : i64} {
  func.func @_loc_scale_kernel(%arg0: i32, %arg1: memref<1x4x256xf32, #tpu.memory_space<vmem>>, %arg2: memref<8x36xf32, #tpu.memory_space<vmem>>, %arg3: memref<9x256xf32, #tpu.memory_space<vmem>>, %arg4: memref<8x1xf32, #tpu.memory_space<vmem>>, %arg5: memref<1x4x256xf32, #tpu.memory_space<vmem>>, %arg6: memref<1x4x256xf32, #tpu.memory_space<vmem>>) attributes {dimension_semantics = [#tpu.dimension_semantics<parallel>], iteration_bounds = array<i64: 2>, scalar_prefetch = 0 : i64, scratch_operands = 0 : i64, tpu.core_type = #tpu.core_type<tc>, window_params = [{transform_indices = @transform_0, window_bounds = array<i64: 1, 4, 256>}, {pipeline_mode = #tpu.pipeline_mode<synchronous>, transform_indices = @transform_1, window_bounds = array<i64: 8, 36>}, {pipeline_mode = #tpu.pipeline_mode<synchronous>, transform_indices = @transform_2, window_bounds = array<i64: 9, 256>}, {pipeline_mode = #tpu.pipeline_mode<synchronous>, transform_indices = @transform_3, window_bounds = array<i64: 8, 1>}, {transform_indices = @transform_4, window_bounds = array<i64: 1, 4, 256>}, {transform_indices = @transform_5, window_bounds = array<i64: 1, 4, 256>}]} {
    %c0 = arith.constant 0 : index
    %c0_0 = arith.constant 0 : index
    %c0_1 = arith.constant 0 : index
    %0 = vector.load %arg1[%c0, %c0_0, %c0_1] : memref<1x4x256xf32, #tpu.memory_space<vmem>>, vector<1x4x256xf32>
    %1 = vector.shape_cast %0 : vector<1x4x256xf32> to vector<4x256xf32>
    %c0_2 = arith.constant 0 : index
    %c0_3 = arith.constant 0 : index
    %2 = vector.load %arg3[%c0_2, %c0_3] : memref<9x256xf32, #tpu.memory_space<vmem>>, vector<9x256xf32>
    %c17_i32 = arith.constant 17 : i32
    %3 = tpu.dynamic_rotate %1 by %c17_i32 dim 1 : vector<4x256xf32>, i32 -> vector<4x256xf32>
    %4 = vector.extract_strided_slice %2 {offsets = [0, 0], sizes = [1, 256], strides = [1, 1]} : vector<9x256xf32> to vector<1x256xf32>
    %5 = vector.broadcast %4 : vector<1x256xf32> to vector<4x256xf32>
    %6 = arith.mulf %3, %5 : vector<4x256xf32>
    %c16_i32 = arith.constant 16 : i32
    %7 = tpu.dynamic_rotate %1 by %c16_i32 dim 1 : vector<4x256xf32>, i32 -> vector<4x256xf32>
    %8 = vector.extract_strided_slice %2 {offsets = [1, 0], sizes = [1, 256], strides = [1, 1]} : vector<9x256xf32> to vector<1x256xf32>
    %9 = vector.broadcast %8 : vector<1x256xf32> to vector<4x256xf32>
    %10 = arith.mulf %7, %9 : vector<4x256xf32>
    %c15_i32 = arith.constant 15 : i32
    %11 = tpu.dynamic_rotate %1 by %c15_i32 dim 1 : vector<4x256xf32>, i32 -> vector<4x256xf32>
    %12 = vector.extract_strided_slice %2 {offsets = [2, 0], sizes = [1, 256], strides = [1, 1]} : vector<9x256xf32> to vector<1x256xf32>
    %13 = vector.broadcast %12 : vector<1x256xf32> to vector<4x256xf32>
    %14 = arith.mulf %11, %13 : vector<4x256xf32>
    %c1_i32 = arith.constant 1 : i32
    %15 = tpu.dynamic_rotate %1 by %c1_i32 dim 1 : vector<4x256xf32>, i32 -> vector<4x256xf32>
    %16 = vector.extract_strided_slice %2 {offsets = [3, 0], sizes = [1, 256], strides = [1, 1]} : vector<9x256xf32> to vector<1x256xf32>
    %17 = vector.broadcast %16 : vector<1x256xf32> to vector<4x256xf32>
    %18 = arith.mulf %15, %17 : vector<4x256xf32>
    %19 = vector.extract_strided_slice %2 {offsets = [4, 0], sizes = [1, 256], strides = [1, 1]} : vector<9x256xf32> to vector<1x256xf32>
    %20 = vector.broadcast %19 : vector<1x256xf32> to vector<4x256xf32>
    %21 = arith.mulf %1, %20 : vector<4x256xf32>
    %c255_i32 = arith.constant 255 : i32
    %22 = tpu.dynamic_rotate %1 by %c255_i32 dim 1 : vector<4x256xf32>, i32 -> vector<4x256xf32>
    %23 = vector.extract_strided_slice %2 {offsets = [5, 0], sizes = [1, 256], strides = [1, 1]} : vector<9x256xf32> to vector<1x256xf32>
    %24 = vector.broadcast %23 : vector<1x256xf32> to vector<4x256xf32>
    %25 = arith.mulf %22, %24 : vector<4x256xf32>
    %c241_i32 = arith.constant 241 : i32
    %26 = tpu.dynamic_rotate %1 by %c241_i32 dim 1 : vector<4x256xf32>, i32 -> vector<4x256xf32>
    %27 = vector.extract_strided_slice %2 {offsets = [6, 0], sizes = [1, 256], strides = [1, 1]} : vector<9x256xf32> to vector<1x256xf32>
    %28 = vector.broadcast %27 : vector<1x256xf32> to vector<4x256xf32>
    %29 = arith.mulf %26, %28 : vector<4x256xf32>
    %c240_i32 = arith.constant 240 : i32
    %30 = tpu.dynamic_rotate %1 by %c240_i32 dim 1 : vector<4x256xf32>, i32 -> vector<4x256xf32>
    %31 = vector.extract_strided_slice %2 {offsets = [7, 0], sizes = [1, 256], strides = [1, 1]} : vector<9x256xf32> to vector<1x256xf32>
    %32 = vector.broadcast %31 : vector<1x256xf32> to vector<4x256xf32>
    %33 = arith.mulf %30, %32 : vector<4x256xf32>
    %c239_i32 = arith.constant 239 : i32
    %34 = tpu.dynamic_rotate %1 by %c239_i32 dim 1 : vector<4x256xf32>, i32 -> vector<4x256xf32>
    %35 = vector.extract_strided_slice %2 {offsets = [8, 0], sizes = [1, 256], strides = [1, 1]} : vector<9x256xf32> to vector<1x256xf32>
    %36 = vector.broadcast %35 : vector<1x256xf32> to vector<4x256xf32>
    %37 = arith.mulf %34, %36 : vector<4x256xf32>
    %38 = tpu.concatenate %6, %10, %14, %18, %21, %25, %29, %33, %37 in 0 : vector<4x256xf32>, vector<4x256xf32>, vector<4x256xf32>, vector<4x256xf32>, vector<4x256xf32>, vector<4x256xf32>, vector<4x256xf32>, vector<4x256xf32>, vector<4x256xf32> -> vector<36x256xf32>
    %c0_4 = arith.constant 0 : index
    %c0_5 = arith.constant 0 : index
    %39 = vector.load %arg2[%c0_4, %c0_5] : memref<8x36xf32, #tpu.memory_space<vmem>>, vector<8x36xf32>
    %cst = arith.constant dense<0.000000e+00> : vector<8x256xf32>
    %40 = tpu.matmul %39, %38, %cst {dimension_numbers = #tpu.dot_dimension_numbers<[1], [0], [0], [1], [0, 0, 1, 1], [], []>} : vector<8x36xf32>, vector<36x256xf32>, vector<8x256xf32> -> vector<8x256xf32>
    %c0_6 = arith.constant 0 : index
    %c0_7 = arith.constant 0 : index
    %41 = vector.load %arg4[%c0_6, %c0_7] : memref<8x1xf32, #tpu.memory_space<vmem>>, vector<8x1xf32>
    %42 = vector.broadcast %41 : vector<8x1xf32> to vector<8x256xf32>
    %43 = arith.addf %40, %42 : vector<8x256xf32>
    %44 = vector.extract_strided_slice %43 {offsets = [0, 0], sizes = [4, 256], strides = [1, 1]} : vector<8x256xf32> to vector<4x256xf32>
    %45 = vector.extract_strided_slice %43 {offsets = [4, 0], sizes = [4, 256], strides = [1, 1]} : vector<8x256xf32> to vector<4x256xf32>
    %cst_8 = arith.constant 0.000000e+00 : f32
    %46 = vector.broadcast %cst_8 : f32 to vector<4x256xf32>
    %47 = arith.maximumf %45, %46 : vector<4x256xf32>
    %48 = math.absf %45 : vector<4x256xf32>
    %cst_9 = arith.constant 0.000000e+00 : f32
    %49 = vector.broadcast %cst_9 : f32 to vector<4x256xf32>
    %50 = arith.subf %49, %48 : vector<4x256xf32>
    %51 = math.exp %50 : vector<4x256xf32>
    %52 = math.log1p %51 : vector<4x256xf32>
    %53 = arith.addf %47, %52 : vector<4x256xf32>
    %cst_10 = arith.constant 9.99999997E-7 : f32
    %54 = vector.broadcast %cst_10 : f32 to vector<4x256xf32>
    %55 = arith.maximumf %53, %54 : vector<4x256xf32>
    %c0_11 = arith.constant 0 : index
    %c0_12 = arith.constant 0 : index
    %c0_13 = arith.constant 0 : index
    %56 = vector.load %arg5[%c0_11, %c0_12, %c0_13] : memref<1x4x256xf32, #tpu.memory_space<vmem>>, vector<1x4x256xf32>
    %57 = vector.shape_cast %56 : vector<1x4x256xf32> to vector<4x256xf32>
    %58 = vector.shape_cast %44 : vector<4x256xf32> to vector<1x4x256xf32>
    tpu.vector_store %arg5[%c0_11, %c0_12, %c0_13], %58 {strides = array<i32>} : memref<1x4x256xf32, #tpu.memory_space<vmem>>, vector<1x4x256xf32>,
    %c0_14 = arith.constant 0 : index
    %c0_15 = arith.constant 0 : index
    %c0_16 = arith.constant 0 : index
    %59 = vector.load %arg6[%c0_14, %c0_15, %c0_16] : memref<1x4x256xf32, #tpu.memory_space<vmem>>, vector<1x4x256xf32>
    %60 = vector.shape_cast %59 : vector<1x4x256xf32> to vector<4x256xf32>
    %61 = vector.shape_cast %55 : vector<4x256xf32> to vector<1x4x256xf32>
    tpu.vector_store %arg6[%c0_14, %c0_15, %c0_16], %61 {strides = array<i32>} : memref<1x4x256xf32, #tpu.memory_space<vmem>>, vector<1x4x256xf32>,
    return
  }
  func.func @transform_0(%arg0: i32) -> (i32, i32, i32) {
    %c0_i32 = arith.constant 0 : i32
    %c0_i32_0 = arith.constant 0 : i32
    %c0_i32_1 = arith.constant 0 : i32
    return %arg0, %c0_i32, %c0_i32_0 : i32, i32, i32
  }
  func.func @transform_1(%arg0: i32) -> (i32, i32) {
    %c0_i32 = arith.constant 0 : i32
    %c0_i32_0 = arith.constant 0 : i32
    %c0_i32_1 = arith.constant 0 : i32
    return %c0_i32, %c0_i32_0 : i32, i32
  }
  func.func @transform_2(%arg0: i32) -> (i32, i32) {
    %c0_i32 = arith.constant 0 : i32
    %c0_i32_0 = arith.constant 0 : i32
    %c0_i32_1 = arith.constant 0 : i32
    return %c0_i32, %c0_i32_0 : i32, i32
  }
  func.func @transform_3(%arg0: i32) -> (i32, i32) {
    %c0_i32 = arith.constant 0 : i32
    %c0_i32_0 = arith.constant 0 : i32
    %c0_i32_1 = arith.constant 0 : i32
    return %c0_i32, %c0_i32_0 : i32, i32
  }
  func.func @transform_4(%arg0: i32) -> (i32, i32, i32) {
    %c0_i32 = arith.constant 0 : i32
    %c0_i32_0 = arith.constant 0 : i32
    %c0_i32_1 = arith.constant 0 : i32
    return %arg0, %c0_i32, %c0_i32_0 : i32, i32, i32
  }
  func.func @transform_5(%arg0: i32) -> (i32, i32, i32) {
    %c0_i32 = arith.constant 0 : i32
    %c0_i32_0 = arith.constant 0 : i32
    %c0_i32_1 = arith.constant 0 : i32
    return %arg0, %c0_i32, %c0_i32_0 : i32, i32, i32
  }
}

</mosaic_0001>

<llo_original>
// kernel: tpu_custom_call.1
$region0: #{tpu_custom_call.1}
  #allocation0 [shape = 'u32[]', space=smem, size = 0x4, offset = 0x4, fixed_abs, tag = 'smem constant byte address 0x4 - core index']
  #allocation1 [shape = 'u32[72,128]{1,0:T(1,128)}', space=vmem, size = 0x9000, scoped, tag = 'internal scratch']
  %s0 = inlined_call_operand.hbm [shape: f32[2,4,256], index: 0, kind: input, shape index: {}]
  %s1 = inlined_call_operand.vmem [shape: f32[8,36], index: 1, kind: input, shape index: {}]
  %s2 = inlined_call_operand.hbm [shape: f32[9,256], index: 2, kind: input, shape index: {}]
  %s3 = inlined_call_operand.vmem [shape: f32[8,1], index: 3, kind: input, shape index: {}]
  %s4 = inlined_call_operand.hbm [shape: f32[2,4,256], index: 4, kind: output, shape index: {0}]
  %s5 = inlined_call_operand.hbm [shape: f32[2,4,256], index: 5, kind: output, shape index: {1}]
  %6 = xla_tuple %s4, %s5
  %s7 = sld [smem:[#allocation0]]
  $region65: #{tpu_custom_call.1} parent=0
    _
  %s9 = ssub.s32 1, %s7
  %s10 = scalar_select 0, %s9, %s7
  $region1: #{tpu_custom_call.1} parent=0
    #allocation2 [shape = 'u8[8192]{0}', space=vmem, size = 0x2000, scoped, tag = 'input window, operand 0']
    #allocation3 [shape = 's32[2]{0}', space=sflag, size = 0x8, scoped, tag = 'scoped memory for tpu_custom_call.1']
    #allocation4 [shape = 's32[2]{0}', space=sflag, size = 0x8, scoped, tag = 'scoped memory for tpu_custom_call.1']
    #allocation5 [shape = 'u8[16384]{0}', space=vmem, size = 0x4000, scoped, tag = 'input window, operand 2, single buffered']
    #allocation6 [shape = 's32[1]{0}', space=sflag, size = 0x4, scoped, tag = 'scoped memory for tpu_custom_call.1']
    #allocation7 [shape = 'u8[8192]{0}', space=vmem, size = 0x2000, scoped, tag = 'output window, operand 0']
    #allocation8 [shape = 'u8[8192]{0}', space=vmem, size = 0x2000, scoped, tag = 'output window, operand 1']
    #allocation9 [shape = 's32[2]{0}', space=sflag, size = 0x8, scoped, tag = 'scoped memory for tpu_custom_call.1']
    %11 = vsyncpa [#allocation3], 0
    %s12 = scalar_lea.sflag [#allocation3], 1
    %13 = vsyncpa %s12, 0
    %14 = vsyncpa [#allocation6], 0
    %15 = vsyncpa [#allocation4], 0
    %s16 = scalar_lea.sflag [#allocation4], 1
    %17 = vsyncpa %s16, 0
    %18 = vsyncpa [#allocation9], 0
    %s19 = scalar_lea.sflag [#allocation9], 1
    %20 = vsyncpa %s19, 0
    loop: start=0, step=1, limit=4
    $region2: #{tpu_custom_call.1} parent=1 // loop_pre_header
      _
    $region3: #{tpu_custom_call.1} parent=1 // loop_header
      %s22 = sphi 0, %s26
      %p23 = scmp.ge.s32.totalorder %s22, 4
      %s32 = sphi 0, %s34
      %s35 = sphi 0, %s32
      %s36 = sphi 0, %s35
      %s52 = sphi 0, %s36
      %s56 = sphi 0, %s56
      %s58 = sphi 0, %s56
      %s59 = sphi 0, %s58
      %s73 = sphi 0, %s59
      %s77 = sphi 0, %s77
      %s79 = sphi 0, %s77
      %s80 = sphi 0, %s79
      %s94 = sphi 0, %s80
      %s98 = sphi 0, %s98
      %s100 = sphi 0, %s98
      %s101 = sphi 0, %s100
      %s115 = sphi 0, %s101
      %s121 = sphi 0, %s123
      %s124 = sphi 0, %s121
      %s125 = sphi 0, %s124
      %s141 = sphi 0, %s125
      %s147 = sphi 0, %s149
      %s150 = sphi 0, %s147
      %s151 = sphi 0, %s150
      %s167 = sphi 0, %s151
    $region4: #{tpu_custom_call.1} parent=1 // loop_header_branch
      %25 = sbr.rel (%p23) target = $region8
    $region5: #{tpu_custom_call.1} parent=1 // loop_body
      %s27 = ssub.s32 %s22, 1
      %s28 = ssub.s32 %s22, 2
      %s29 = sadd.s32 %s22, 1
      %s30 = ssub.s32 %s22, %s29
      %p31 = scmp.eq.s32.totalorder %s30, 0
      %s33 = sadd.s32 %s32, 1
      %s34 = scalar_select %p31, %s32, %s33
      %p37 = pneg %p31
      %p38 = scmp.eq.s32.totalorder %s22, 1
      %p39 = por %p37, %p38
      %p40 = scmp.ne.s32.totalorder %s32, %s35
      %p41 = scmp.eq.s32.totalorder %s22, 0
      %p42 = por %p40, %p41
      %p43 = scmp.ne.s32.totalorder %s32, %s35
      %p44 = scmp.eq.s32.totalorder %s27, 1
      %p45 = por %p43, %p44
      %p46 = scmp.ne.s32.totalorder %s35, %s36
      %p47 = scmp.eq.s32.totalorder %s27, 0
      %p48 = por %p46, %p47
      %p49 = scmp.ne.s32.totalorder %s35, %s36
      %p50 = scmp.eq.s32.totalorder %s28, 1
      %p51 = por %p49, %p50
      %p53 = scmp.ne.s32.totalorder %s36, %s52
      %p54 = scmp.eq.s32.totalorder %s28, 0
      %p55 = por %p53, %p54
      %s57 = sadd.s32 %s56, 1
      %p60 = scmp.eq.s32.totalorder %s22, 1
      %p61 = scmp.ne.s32.totalorder %s56, %s58
      %p62 = scmp.eq.s32.totalorder %s22, 0
      %p63 = por %p61, %p62
      %p64 = scmp.ne.s32.totalorder %s56, %s58
      %p65 = scmp.eq.s32.totalorder %s27, 1
      %p66 = por %p64, %p65
      %p67 = scmp.ne.s32.totalorder %s58, %s59
      %p68 = scmp.eq.s32.totalorder %s27, 0
      %p69 = por %p67, %p68
      %p70 = scmp.ne.s32.totalorder %s58, %s59
      %p71 = scmp.eq.s32.totalorder %s28, 1
      %p72 = por %p70, %p71
      %p74 = scmp.ne.s32.totalorder %s59, %s73
      %p75 = scmp.eq.s32.totalorder %s28, 0
      %p76 = por %p74, %p75
      %s78 = sadd.s32 %s77, 1
      %p81 = scmp.eq.s32.totalorder %s22, 1
      %p82 = scmp.ne.s32.totalorder %s77, %s79
      %p83 = scmp.eq.s32.totalorder %s22, 0
      %p84 = por %p82, %p83
      %p85 = scmp.ne.s32.totalorder %s77, %s79
      %p86 = scmp.eq.s32.totalorder %s27, 1
      %p87 = por %p85, %p86
      %p88 = scmp.ne.s32.totalorder %s79, %s80
      %p89 = scmp.eq.s32.totalorder %s27, 0
      %p90 = por %p88, %p89
      %p91 = scmp.ne.s32.totalorder %s79, %s80
      %p92 = scmp.eq.s32.totalorder %s28, 1
      %p93 = por %p91, %p92
      %p95 = scmp.ne.s32.totalorder %s80, %s94
      %p96 = scmp.eq.s32.totalorder %s28, 0
      %p97 = por %p95, %p96
      %s99 = sadd.s32 %s98, 1
      %p102 = scmp.eq.s32.totalorder %s22, 1
      %p103 = scmp.ne.s32.totalorder %s98, %s100
      %p104 = scmp.eq.s32.totalorder %s22, 0
      %p105 = por %p103, %p104
      %p106 = scmp.ne.s32.totalorder %s98, %s100
      %p107 = scmp.eq.s32.totalorder %s27, 1
      %p108 = por %p106, %p107
      %p109 = scmp.ne.s32.totalorder %s100, %s101
      %p110 = scmp.eq.s32.totalorder %s27, 0
      %p111 = por %p109, %p110
      %p112 = scmp.ne.s32.totalorder %s100, %s101
      %p113 = scmp.eq.s32.totalorder %s28, 1
      %p114 = por %p112, %p113
      %p116 = scmp.ne.s32.totalorder %s101, %s115
      %p117 = scmp.eq.s32.totalorder %s28, 0
      %p118 = por %p116, %p117
      %s119 = ssub.s32 %s22, %s29
      %p120 = scmp.eq.s32.totalorder %s119, 0
      %s122 = sadd.s32 %s121, 1
      %s123 = scalar_select %p120, %s121, %s122
      %p126 = pneg %p120
      %p127 = scmp.eq.s32.totalorder %s22, 1
      %p128 = por %p126, %p127
      %p129 = scmp.ne.s32.totalorder %s121, %s124
      %p130 = scmp.eq.s32.totalorder %s22, 0
      %p131 = por %p129, %p130
      %p132 = scmp.ne.s32.totalorder %s121, %s124
      %p133 = scmp.eq.s32.totalorder %s27, 1
      %p134 = por %p132, %p133
      %p135 = scmp.ne.s32.totalorder %s124, %s125
      %p136 = scmp.eq.s32.totalorder %s27, 0
      %p137 = por %p135, %p136
      %p138 = scmp.ne.s32.totalorder %s124, %s125
      %p139 = scmp.eq.s32.totalorder %s28, 1
      %p140 = por %p138, %p139
      %p142 = scmp.ne.s32.totalorder %s125, %s141
      %p143 = scmp.eq.s32.totalorder %s28, 0
      %p144 = por %p142, %p143
      %s145 = ssub.s32 %s22, %s29
      %p146 = scmp.eq.s32.totalorder %s145, 0
      %s148 = sadd.s32 %s147, 1
      %s149 = scalar_select %p146, %s147, %s148
      %p152 = pneg %p146
      %p153 = scmp.eq.s32.totalorder %s22, 1
      %p154 = por %p152, %p153
      %p155 = scmp.ne.s32.totalorder %s147, %s150
      %p156 = scmp.eq.s32.totalorder %s22, 0
      %p157 = por %p155, %p156
      %p158 = scmp.ne.s32.totalorder %s147, %s150
      %p159 = scmp.eq.s32.totalorder %s27, 1
      %p160 = por %p158, %p159
      %p161 = scmp.ne.s32.totalorder %s150, %s151
      %p162 = scmp.eq.s32.totalorder %s27, 0
      %p163 = por %p161, %p162
      %p164 = scmp.ne.s32.totalorder %s150, %s151
      %p165 = scmp.eq.s32.totalorder %s28, 1
      %p166 = por %p164, %p165
      %p168 = scmp.ne.s32.totalorder %s151, %s167
      %p169 = scmp.eq.s32.totalorder %s28, 0
      %p170 = por %p168, %p169
      %p171 = scmp.le.s32.totalorder 1, %s22
      %p172 = scmp.lt.s32.totalorder %s22, 3
      %p173 = pnand %p171, %p172
      %p174 = pneg %p173
      // Predicated region
      $region9: #{tpu_custom_call.1} parent=5 // pred_check
        _
      $region10: #{tpu_custom_call.1} parent=5 // pred_check_branch
        %176 = sbr.rel (%p173) target = $region12
      $region11: #{tpu_custom_call.1} parent=5 // pred_region
        %s177 = ssub.s32 %s22, 1
        // Predicated region
        $region13: #{tpu_custom_call.1} parent=11 // pred_check
          %p178 = pneg %p69
        $region14: #{tpu_custom_call.1} parent=11 // pred_check_branch
          %180 = sbr.rel (%p178) target = $region16
        $region15: #{tpu_custom_call.1} parent=11 // pred_region
          _
        $region16: #{tpu_custom_call.1} parent=11 // pred_fallthru
          _
        // Predicated region
        $region17: #{tpu_custom_call.1} parent=11 // pred_check
          %p181 = pneg %p90
        $region18: #{tpu_custom_call.1} parent=11 // pred_check_branch
          %183 = sbr.rel (%p181) target = $region20
        $region19: #{tpu_custom_call.1} parent=11 // pred_region
          %185 = vsyncadd [#allocation6], 0
          %s186 = sshll.u32 %s2, 4
          %s187 = int_to_ptr.hbm [resolvable:$true] %s186
          %s188 = sshll.u32 [#allocation5], 4
          %s189 = int_to_ptr.vmem [resolvable:$true] %s188
          %194 = dma.hbm_to_vmem [thread:$0]  %s187, 512, %s189, [#allocation6], 256, 256, 16
        $region20: #{tpu_custom_call.1} parent=11 // pred_fallthru
          _
        // Predicated region
        $region21: #{tpu_custom_call.1} parent=11 // pred_check
          %p195 = pneg %p111
        $region22: #{tpu_custom_call.1} parent=11 // pred_check_branch
          %197 = sbr.rel (%p195) target = $region24
        $region23: #{tpu_custom_call.1} parent=11 // pred_region
          _
        $region24: #{tpu_custom_call.1} parent=11 // pred_fallthru
          _
      $region12: #{tpu_custom_call.1} parent=5 // pred_fallthru
        _
      %p198 = scmp.lt.s32.totalorder %s22, 2
      // Predicated region
      $region25: #{tpu_custom_call.1} parent=5 // pred_check
        %p199 = pneg %p198
      $region26: #{tpu_custom_call.1} parent=5 // pred_check_branch
        %201 = sbr.rel (%p199) target = $region28
      $region27: #{tpu_custom_call.1} parent=5 // pred_region
        // Predicated region
        $region29: #{tpu_custom_call.1} parent=27 // pred_check
          %p202 = pneg %p42
        $region30: #{tpu_custom_call.1} parent=27 // pred_check_branch
          %204 = sbr.rel (%p202) target = $region32
        $region31: #{tpu_custom_call.1} parent=27 // pred_region
          %s205 = sand.u32 %s32, 1
          %s206 = scalar_lea.sflag [#allocation3], %s205
          %s207 = sand.u32 %s32, 1
          %s208 = smul.addr %s207, 8
          %s209 = scalar_lea.vmem [#allocation2], %s208
          %211 = vsyncadd %s206, 0
          %s212 = smul.addr %s22, 2
          %s213 = smul.addr %s212, 4
          %s214 = scalar_lea.hbm %s0, %s213
          %s216 = sshll.u32 %s214, 4
          %s217 = int_to_ptr.hbm [resolvable:$true] %s216
          %s218 = sshll.u32 %s209, 4
          %s219 = int_to_ptr.vmem [resolvable:$true] %s218
          %221 = dma.hbm_to_vmem [thread:$0]  %s217, 128, %s219, %s206
        $region32: #{tpu_custom_call.1} parent=27 // pred_fallthru
          _
      $region28: #{tpu_custom_call.1} parent=5 // pred_fallthru
        _
      %p222 = scmp.le.s32.totalorder 1, %s22
      %p223 = scmp.lt.s32.totalorder %s22, 3
      %p224 = pnand %p222, %p223
      %p225 = pneg %p224
      // Predicated region
      $region33: #{tpu_custom_call.1} parent=5 // pred_check
        _
      $region34: #{tpu_custom_call.1} parent=5 // pred_check_branch
        %227 = sbr.rel (%p224) target = $region36
      $region35: #{tpu_custom_call.1} parent=5 // pred_region
        %s228 = ssub.s32 %s22, 1
        %s229 = sand.u32 %s35, 1
        %s230 = scalar_lea.sflag [#allocation3], %s229
        %s231 = sand.u32 %s35, 1
        %s232 = smul.addr %s231, 8
        %s233 = scalar_lea.vmem [#allocation2], %s232
        // Predicated region
        $region37: #{tpu_custom_call.1} parent=35 // pred_check
          %p234 = pneg %p48
        $region38: #{tpu_custom_call.1} parent=35 // pred_check_branch
          %236 = sbr.rel (%p234) target = $region40
        $region39: #{tpu_custom_call.1} parent=35 // pred_region
          %238 = dma.done %s230, 128
        $region40: #{tpu_custom_call.1} parent=35 // pred_fallthru
          _
        // Predicated region
        $region41: #{tpu_custom_call.1} parent=35 // pred_check
          %p239 = pneg %p90
        $region42: #{tpu_custom_call.1} parent=35 // pred_check_branch
          %241 = sbr.rel (%p239) target = $region44
        $region43: #{tpu_custom_call.1} parent=35 // pred_region
          %243 = dma.done [#allocation6], 512
        $region44: #{tpu_custom_call.1} parent=35 // pred_fallthru
          _
        %s244 = sand.u32 %s35, 1
        %s245 = scalar_lea.sflag [#allocation3], %s244
        %s246 = sand.u32 %s35, 1
        %s247 = smul.addr %s246, 8
        %s248 = scalar_lea.vmem [#allocation2], %s247
        %p249 = pneg %p48
        %p250 = pneg %p45
        %p251 = pneg %p69
        %p252 = pneg %p66
        %p253 = pneg %p90
        %p254 = pneg %p87
        %p255 = pneg %p111
        %p256 = pneg %p108
        %p257 = pneg %p137
        %p258 = pneg %p134
        %s259 = sand.u32 %s124, 1
        %s260 = scalar_lea.sflag [#allocation4], %s259
        %s261 = sand.u32 %s124, 1
        %s262 = smul.addr %s261, 8
        %s263 = scalar_lea.vmem [#allocation7], %s262
        %p264 = pneg %p163
        %p265 = pneg %p160
        %s266 = sand.u32 %s150, 1
        %s267 = scalar_lea.sflag [#allocation9], %s266
        %s268 = sand.u32 %s150, 1
        %s269 = smul.addr %s268, 8
        %s270 = scalar_lea.vmem [#allocation8], %s269
        %v271 = vld [vmem:[%s233] sm:$0xff]
        %v272 = vld [vmem:[#allocation5] sm:$0xff]
        %v273 = vld [vmem:[#allocation5 + $0x8] sm:$0xff]
        %v274 = vld [vmem:[#allocation5 + $0x10] sm:$0x1]
        %v275 = vld [vmem:[#allocation5 + $0x18] sm:$0x1]
        %277 = vst [vmem:[#allocation1] ss:$2 sm:$0xff] %v271
        %v278 = vld.sshfl [vmem:[#allocation1] sm:$0xff pattern:$0x75316420]
        %v279 = vld.sshfl [vmem:[#allocation1 + $0x8] sm:$0xff pattern:$0x75316420]
        %282 = vrot.lane.b32.xlu0 %v278, 17
        %v283 = vpop.permute.xlu0 %282
        %284 = vrot.lane.b32.xlu0 %v279, 17
        %v285 = vpop.permute.xlu0 %284
        %v286 = vlaneseq
        %v287 = vand.u32 %v286, 127
        %vm288 = vcmp.lt.s32.totalorder %v287, 17
        %v289 = vsel %vm288, %v283, %v285
        %v290 = vsel %vm288, %v285, %v283
        %v291 = vperm.slane %v272, 0
        %v292 = vperm.slane %v273, 0
        %v293 = vmul.f32 %v290, %v291
        %v294 = vmul.f32 %v289, %v292
        %295 = vst [vmem:[#allocation1] ss:$2 sm:$0xff] %v271
        %v296 = vld.sshfl [vmem:[#allocation1] sm:$0xff pattern:$0x75316420]
        %v297 = vld.sshfl [vmem:[#allocation1 + $0x8] sm:$0xff pattern:$0x75316420]
        %300 = vrot.lane.b32.xlu0 %v296, 16
        %v301 = vpop.permute.xlu0 %300
        %302 = vrot.lane.b32.xlu0 %v297, 16
        %v303 = vpop.permute.xlu0 %302
        %vm304 = vcmp.lt.s32.totalorder %v287, 16
        %v305 = vsel %vm304, %v301, %v303
        %v306 = vsel %vm304, %v303, %v301
        %v307 = vperm.slane %v272, 1
        %v308 = vperm.slane %v273, 1
        %v309 = vmul.f32 %v306, %v307
        %v310 = vmul.f32 %v305, %v308
        %311 = vst [vmem:[#allocation1] ss:$2 sm:$0xff] %v271
        %v312 = vld.sshfl [vmem:[#allocation1] sm:$0xff pattern:$0x75316420]
        %v313 = vld.sshfl [vmem:[#allocation1 + $0x8] sm:$0xff pattern:$0x75316420]
        %316 = vrot.lane.b32.xlu0 %v312, 15
        %v317 = vpop.permute.xlu0 %316
        %318 = vrot.lane.b32.xlu0 %v313, 15
        %v319 = vpop.permute.xlu0 %318
        %vm320 = vcmp.lt.s32.totalorder %v287, 15
        %v321 = vsel %vm320, %v317, %v319
        %v322 = vsel %vm320, %v319, %v317
        %v323 = vperm.slane %v272, 2
        %v324 = vperm.slane %v273, 2
        %v325 = vmul.f32 %v322, %v323
        %v326 = vmul.f32 %v321, %v324
        %327 = vst [vmem:[#allocation1] ss:$2 sm:$0xff] %v271
        %v328 = vld.sshfl [vmem:[#allocation1] sm:$0xff pattern:$0x75316420]
        %v329 = vld.sshfl [vmem:[#allocation1 + $0x8] sm:$0xff pattern:$0x75316420]
        %332 = vrot.lane.b32.xlu0 %v328, 1
        %v333 = vpop.permute.xlu0 %332
        %334 = vrot.lane.b32.xlu0 %v329, 1
        %v335 = vpop.permute.xlu0 %334
        %vm336 = vcmp.lt.s32.totalorder %v287, 1
        %v337 = vsel %vm336, %v333, %v335
        %v338 = vsel %vm336, %v335, %v333
        %v339 = vperm.slane %v272, 3
        %v340 = vperm.slane %v273, 3
        %v341 = vmul.f32 %v338, %v339
        %v342 = vmul.f32 %v337, %v340
        %v343 = vperm.slane %v272, 4
        %v344 = vperm.slane %v273, 4
        %v347 = vrot.slane %v344, 4
        %vm348 = vcmask 1043456
        %v349 = vsel %vm348, %v343, %v347
        %v351 = vmul.f32 %v271, %v349
        %352 = vst [vmem:[#allocation1] ss:$2 sm:$0xff] %v271
        %v353 = vld.sshfl [vmem:[#allocation1] sm:$0xff pattern:$0x75316420]
        %v354 = vld.sshfl [vmem:[#allocation1 + $0x8] sm:$0xff pattern:$0x75316420]
        %357 = vrot.lane.b32.xlu0 %v353, 127
        %v358 = vpop.permute.xlu0 %357
        %359 = vrot.lane.b32.xlu0 %v354, 127
        %v360 = vpop.permute.xlu0 %359
        %vm361 = vcmp.lt.s32.totalorder %v287, 127
        %v362 = vsel %vm361, %v358, %v360
        %v363 = vsel %vm361, %v360, %v358
        %v364 = vperm.slane %v272, 5
        %v365 = vperm.slane %v273, 5
        %v366 = vmul.f32 %v362, %v364
        %v367 = vmul.f32 %v363, %v365
        %368 = vst [vmem:[#allocation1] ss:$2 sm:$0xff] %v271
        %v369 = vld.sshfl [vmem:[#allocation1] sm:$0xff pattern:$0x75316420]
        %v370 = vld.sshfl [vmem:[#allocation1 + $0x8] sm:$0xff pattern:$0x75316420]
        %373 = vrot.lane.b32.xlu0 %v369, 113
        %v374 = vpop.permute.xlu0 %373
        %375 = vrot.lane.b32.xlu0 %v370, 113
        %v376 = vpop.permute.xlu0 %375
        %vm377 = vcmp.lt.s32.totalorder %v287, 113
        %v378 = vsel %vm377, %v374, %v376
        %v379 = vsel %vm377, %v376, %v374
        %v380 = vperm.slane %v272, 6
        %v381 = vperm.slane %v273, 6
        %v382 = vmul.f32 %v378, %v380
        %v383 = vmul.f32 %v379, %v381
        %384 = vst [vmem:[#allocation1] ss:$2 sm:$0xff] %v271
        %v385 = vld.sshfl [vmem:[#allocation1] sm:$0xff pattern:$0x75316420]
        %v386 = vld.sshfl [vmem:[#allocation1 + $0x8] sm:$0xff pattern:$0x75316420]
        %389 = vrot.lane.b32.xlu0 %v385, 112
        %v390 = vpop.permute.xlu0 %389
        %391 = vrot.lane.b32.xlu0 %v386, 112
        %v392 = vpop.permute.xlu0 %391
        %vm393 = vcmp.lt.s32.totalorder %v287, 112
        %v394 = vsel %vm393, %v390, %v392
        %v395 = vsel %vm393, %v392, %v390
        %v396 = vperm.slane %v272, 7
        %v397 = vperm.slane %v273, 7
        %v398 = vmul.f32 %v394, %v396
        %v399 = vmul.f32 %v395, %v397
        %400 = vst [vmem:[#allocation1] ss:$2 sm:$0xff] %v271
        %v401 = vld.sshfl [vmem:[#allocation1] sm:$0xff pattern:$0x75316420]
        %v402 = vld.sshfl [vmem:[#allocation1 + $0x8] sm:$0xff pattern:$0x75316420]
        %405 = vrot.lane.b32.xlu0 %v401, 111
        %v406 = vpop.permute.xlu0 %405
        %407 = vrot.lane.b32.xlu0 %v402, 111
        %v408 = vpop.permute.xlu0 %407
        %vm409 = vcmp.lt.s32.totalorder %v287, 111
        %v410 = vsel %vm409, %v406, %v408
        %v411 = vsel %vm409, %v408, %v406
        %v412 = vperm.slane %v274, 0
        %v413 = vperm.slane %v275, 0
        %v414 = vmul.f32 %v410, %v412
        %v415 = vmul.f32 %v411, %v413
        %v418 = vrot.slane %v309, 4
        %v419 = vrot.slane %v310, 4
        %v424 = vrot.slane %v341, 4
        %v425 = vrot.slane %v342, 4
        %429 = vst [vmem:[#allocation1] ss:$2 sm:$0xff] %v351
        %v430 = vld.sshfl [vmem:[#allocation1] sm:$0xff pattern:$0x75316420]
        %v431 = vld.sshfl [vmem:[#allocation1 + $0x8] sm:$0xff pattern:$0x75316420]
        %v436 = vrot.slane %v366, 4
        %v437 = vrot.slane %v367, 4
        %v442 = vrot.slane %v398, 4
        %v443 = vrot.slane %v399, 4
        %v446 = vsel %vm348, %v293, %v418
        %v447 = vsel %vm348, %v294, %v419
        %v448 = vsel %vm348, %v325, %v424
        %v449 = vsel %vm348, %v326, %v425
        %v450 = vsel %vm348, %v430, %v436
        %v451 = vsel %vm348, %v431, %v437
        %v452 = vsel %vm348, %v382, %v442
        %v453 = vsel %vm348, %v383, %v443
        %v454 = vld [vmem:[%s1] sm:$0xff]
        %v455 = vld [vmem:[%s3] sm:$0xff]
        %457 = vset.pattern.permute.xlu0 0
        %458 = vperm.xlu0 %457, %v455
        %v459 = vpop.permute.xlu0 %458
        %vm461 = vcmask 293888
        %v463 = vsel %vm461, %v454, 0
        %v466 = vsel %vm348, %v414, 0
        %v469 = vsel %vm348, %v415, 0
        %471 = vmatpush.msra.mxu0 0.0
        %472 = vmatpush.msra.mxu0 0.0
        %473 = vmatpush.msra.mxu0 0.0
        %474 = vmatpush.msra.mxu0 0.0
        %475 = vmatpush.msra.mxu0 0.0
        %476 = vmatpush.msra.mxu0 0.0
        %477 = vmatpush.msra.mxu0 0.0
        %478 = vmatpush.msra.mxu0 0.0
        %479 = vmatpush.msra.mxu0 0.0
        %480 = vmatpush.msra.mxu0 0.0
        %481 = vmatpush.msra.mxu0 0.0
        %482 = vmatpush.msra.mxu0 %v466
        %483 = vmatpush.msra.mxu0 %v452
        %484 = vmatpush.msra.mxu0 %v450
        %485 = vmatpush.msra.mxu0 %v448
        %486 = vmatpush.msra.mxu0 %v446
        %487 = vmatmul.f32.gmra.mxu0 %v463
        %v488 = vpop.f32.mrf.mxu0
        %v489 = vadd.f32 %v459, %v488
        %490 = vdwg.mxu0
        %491 = vmatpush.msra.mxu0 0.0
        %492 = vmatpush.msra.mxu0 0.0
        %493 = vmatpush.msra.mxu0 0.0
        %494 = vmatpush.msra.mxu0 0.0
        %495 = vmatpush.msra.mxu0 0.0
        %496 = vmatpush.msra.mxu0 0.0
        %497 = vmatpush.msra.mxu0 0.0
        %498 = vmatpush.msra.mxu0 0.0
        %499 = vmatpush.msra.mxu0 0.0
        %500 = vmatpush.msra.mxu0 0.0
        %501 = vmatpush.msra.mxu0 0.0
        %502 = vmatpush.msra.mxu0 %v469
        %503 = vmatpush.msra.mxu0 %v453
        %504 = vmatpush.msra.mxu0 %v451
        %505 = vmatpush.msra.mxu0 %v449
        %506 = vmatpush.msra.mxu0 %v447
        %507 = vmatmul.f32.gmra.mxu0 %v463
        %v508 = vpop.f32.mrf.mxu0
        %v509 = vadd.f32 %v459, %v508
        %510 = vdwg.mxu0
        %v511 = vmax.f32 %v489, 0.0
        %v512 = vmax.f32 %v509, 0.0
        %v513 = vand.u32 2147483647, %v489
        %v514 = vand.u32 2147483647, %v509
        %v515 = vsub.f32 0.0, %v513
        %v516 = vsub.f32 0.0, %v514
        %v517 = vmul.f32 %v515, 1.442695
        %v518 = vpow.pop %v517
        %v519 = vmul.f32 %v516, 1.442695
        %v520 = vpow.pop %v519
        %v521 = vadd.f32 %v518, 1.0
        %v522 = vlog2.pop %v521
        %v523 = vmul.f32 %v522, 0.6931472
        %v524 = vmul.f32 -0.5, %v518
        %v525 = vadd.f32 %v524, 1.0
        %v526 = vmul.f32 %v525, %v518
        %v527 = vand.u32 2147483647, %v518
        %vm528 = vcmp.lt.f32.partialorder %v527, 0.0004427343
        %v529 = vsel %vm528, %v526, %v523
        %v530 = vadd.f32 %v520, 1.0
        %v531 = vlog2.pop %v530
        %v532 = vmul.f32 %v531, 0.6931472
        %v533 = vmul.f32 -0.5, %v520
        %v534 = vadd.f32 %v533, 1.0
        %v535 = vmul.f32 %v534, %v520
        %v536 = vand.u32 2147483647, %v520
        %vm537 = vcmp.lt.f32.partialorder %v536, 0.0004427343
        %v538 = vsel %vm537, %v535, %v532
        %v539 = vadd.f32 %v511, %v529
        %v540 = vadd.f32 %v512, %v538
        %v541 = vmax.f32 %v539, 1e-06
        %v542 = vmax.f32 %v540, 1e-06
        %v545 = vrot.slane %v509, 4
        %v546 = vsel %vm348, %v489, %v545
        %548 = vst [vmem:[%s263] sm:$0xff] %v546
        %551 = vst.sshfl [vmem:[#allocation1] sm:$0xff pattern:$0x75316420] %v541
        %552 = vst.sshfl [vmem:[#allocation1 + $0x8] sm:$0xff pattern:$0x75316420] %v542
        %s553 = scalar_lea.vmem [#allocation1], 1
        %v554 = vld [vmem:[%s553] ss:$2 sm:$0xff]
        %556 = vst [vmem:[%s270] sm:$0xff] %v554
        %s557 = sand.u32 %s124, 1
        %s558 = scalar_lea.sflag [#allocation4], %s557
        %s559 = sand.u32 %s124, 1
        %s560 = smul.addr %s559, 8
        %s561 = scalar_lea.vmem [#allocation7], %s560
        %s562 = sand.u32 %s150, 1
        %s563 = scalar_lea.sflag [#allocation9], %s562
        %s564 = sand.u32 %s150, 1
        %s565 = smul.addr %s564, 8
        %s566 = scalar_lea.vmem [#allocation8], %s565
        // Predicated region
        $region45: #{tpu_custom_call.1} parent=35 // pred_check
          %p567 = pneg %p134
        $region46: #{tpu_custom_call.1} parent=35 // pred_check_branch
          %569 = sbr.rel (%p567) target = $region48
        $region47: #{tpu_custom_call.1} parent=35 // pred_region
          %571 = vsyncadd %s558, 0
          %s572 = smul.addr %s27, 2
          %s573 = smul.addr %s572, 4
          %s574 = scalar_lea.hbm %s4, %s573
          %s576 = sshll.u32 %s561, 4
          %s577 = int_to_ptr.vmem [resolvable:$true] %s576
          %s578 = sshll.u32 %s574, 4
          %s579 = int_to_ptr.hbm [resolvable:$true] %s578
          %581 = dma.vmem_to_hbm [thread:$0]  %s577, 128, %s579, %s558
        $region48: #{tpu_custom_call.1} parent=35 // pred_fallthru
          _
        // Predicated region
        $region49: #{tpu_custom_call.1} parent=35 // pred_check
          %p582 = pneg %p160
        $region50: #{tpu_custom_call.1} parent=35 // pred_check_branch
          %584 = sbr.rel (%p582) target = $region52
        $region51: #{tpu_custom_call.1} parent=35 // pred_region
          %586 = vsyncadd %s563, 0
          %s587 = smul.addr %s27, 2
          %s588 = smul.addr %s587, 4
          %s589 = scalar_lea.hbm %s5, %s588
          %s591 = sshll.u32 %s566, 4
          %s592 = int_to_ptr.vmem [resolvable:$true] %s591
          %s593 = sshll.u32 %s589, 4
          %s594 = int_to_ptr.hbm [resolvable:$true] %s593
          %596 = dma.vmem_to_hbm [thread:$0]  %s592, 128, %s594, %s563
        $region52: #{tpu_custom_call.1} parent=35 // pred_fallthru
          _
      $region36: #{tpu_custom_call.1} parent=5 // pred_fallthru
        _
      %p597 = scmp.le.s32.totalorder 2, %s22
      // Predicated region
      $region53: #{tpu_custom_call.1} parent=5 // pred_check
        %p598 = pneg %p597
      $region54: #{tpu_custom_call.1} parent=5 // pred_check_branch
        %600 = sbr.rel (%p598) target = $region56
      $region55: #{tpu_custom_call.1} parent=5 // pred_region
        %s601 = ssub.s32 %s22, 2
        // Predicated region
        $region57: #{tpu_custom_call.1} parent=55 // pred_check
          %p602 = pneg %p140
        $region58: #{tpu_custom_call.1} parent=55 // pred_check_branch
          %604 = sbr.rel (%p602) target = $region60
        $region59: #{tpu_custom_call.1} parent=55 // pred_region
          %s605 = sand.u32 %s125, 1
          %s606 = scalar_lea.sflag [#allocation4], %s605
          %s607 = sand.u32 %s125, 1
          %s608 = smul.addr %s607, 8
          %s609 = scalar_lea.vmem [#allocation7], %s608
          %611 = dma.done %s606, 128
        $region60: #{tpu_custom_call.1} parent=55 // pred_fallthru
          _
        // Predicated region
        $region61: #{tpu_custom_call.1} parent=55 // pred_check
          %p612 = pneg %p166
        $region62: #{tpu_custom_call.1} parent=55 // pred_check_branch
          %614 = sbr.rel (%p612) target = $region64
        $region63: #{tpu_custom_call.1} parent=55 // pred_region
          %s615 = sand.u32 %s151, 1
          %s616 = scalar_lea.sflag [#allocation9], %s615
          %s617 = sand.u32 %s151, 1
          %s618 = smul.addr %s617, 8
          %s619 = scalar_lea.vmem [#allocation8], %s618
          %621 = dma.done %s616, 128
        $region64: #{tpu_custom_call.1} parent=55 // pred_fallthru
          _
      $region56: #{tpu_custom_call.1} parent=5 // pred_fallthru
        _
    $region6: #{tpu_custom_call.1} parent=1 // loop_footer
      %s26 = sadd.s32 1, %s22
    $region7: #{tpu_custom_call.1} parent=1 // loop_footer_branch
      %21 = sbr.rel target = $region3
    $region8: #{tpu_custom_call.1} parent=1 // loop_exit
      _
    %622 = vsyncpa [#allocation3], 1
    %s623 = scalar_lea.sflag [#allocation3], 1
    %624 = vsyncpa %s623, 1
    %625 = vsyncpa [#allocation6], 1
    %626 = vsyncpa [#allocation4], 1
    %s627 = scalar_lea.sflag [#allocation4], 1
    %628 = vsyncpa %s627, 1
    %629 = vsyncpa [#allocation9], 1
    %s630 = scalar_lea.sflag [#allocation9], 1
    %631 = vsyncpa %s630, 1

</llo_original>
